<compile_context>
chip_gen: v7x
topology: tpu7x:2x2x1
jax: 0.10.0
libtpu: 0.0.40
codegen_flags: <defaults>
</compile_context>

<pallas_src>
import jax
import jax.numpy as jnp
from jax.experimental import pallas as pl
from jax.experimental.pallas import tpu as pltpu

K = 21                 # Conv1d kernel size
L_IN = 340             # input length (flatten -> 320 matches Linear(320, 100))
L_OUT = L_IN - K + 1   # 320
H1 = 100               # hidden width
H_PAD = 128            # hidden width padded to full lane width


def _round_up(n, m):
    return ((n + m - 1) // m) * m


# ----------------------------------------------------------------------------
# Kernel
# ----------------------------------------------------------------------------
def classifier_kernel(x_ref, wf_ref, bf_ref, wa_ref, ba_ref,
                      v1_ref, v2_ref, c_ref, o_ref):
    x = x_ref[...]                                                # (TB, 340)

    # Fused Conv1d(1,1,21) + Linear(320,100):  one (TB,340)@(340,128) matmul.
    # The module's back-to-back ReLU, ReLU collapses to a single ReLU.
    h = jnp.dot(x, wf_ref[...], preferred_element_type=jnp.float32) + bf_ref[...]
    h = jnp.maximum(h, 0.0)                                       # (TB,128) f32, pad lanes = 0

    # ResBlock inner branch: r1 = relu(h @ Wa + ba)   (only matmul inputs are
    # cast to the compute dtype; elementwise work stays f32 for v5e).
    hc = h.astype(wa_ref.dtype)
    r1 = jnp.dot(hc, wa_ref[...], preferred_element_type=jnp.float32) + ba_ref[...]
    r1 = jnp.maximum(r1, 0.0)                                     # (TB,128) f32

    # Residual add + final Linear(100,1) pre-fused into two N=1 matmuls:
    #   out = h @ v1 + r1 @ v2 + c        (v2 = Wb^T @ Wo^T, c = bb.Wo + bo)
    out = (jnp.dot(hc, v1_ref[...], preferred_element_type=jnp.float32)
           + jnp.dot(r1.astype(v2_ref.dtype), v2_ref[...],
                     preferred_element_type=jnp.float32)
           + c_ref[0])                                            # (TB, 1) f32
    o_ref[...] = out.astype(o_ref.dtype)


# ----------------------------------------------------------------------------
# Parameter preparation (conv + output-layer fusion, 128-lane padding)
# ----------------------------------------------------------------------------
def conv1d_band_matrix(w):
    """(L_IN, L_OUT) matrix M with M[i, j] = w[i - j] for 0 <= i-j < K, so that
    (x @ M)[b, j] = sum_k x[b, j+k] * w[k]  == PyTorch Conv1d (cross-correlation)."""
    i = jnp.arange(L_IN)[:, None]
    j = jnp.arange(L_OUT)[None, :]
    d = i - j
    valid = (d >= 0) & (d < K)
    return jnp.where(valid, w[jnp.clip(d, 0, K - 1)], 0.0).astype(jnp.float32)


def _pad2(a, rows, cols):
    return jnp.pad(a, ((0, rows - a.shape[0]), (0, cols - a.shape[1])))


def prepare_kernel_params(raw, compute_dtype=jnp.bfloat16):
    """raw: PyTorch-layout params. Returns fused + 128-padded kernel operands.

    compute_dtype applies to x-facing matmul weights only; biases and the
    fused output scalar stay f32 (accumulation is always f32)."""
    # Conv1d -> Linear(320,100) exact fusion (no nonlinearity in between).
    band = conv1d_band_matrix(raw["conv_w"].reshape(-1))          # (340, 320)
    w1_t = raw["lin1_w"].T.astype(jnp.float32)                    # (320, 100)
    w_fused = jnp.dot(band, w1_t, precision=jax.lax.Precision.HIGHEST)   # (340, 100)
    b_fused = raw["lin1_b"] + raw["conv_b"].reshape(()) * jnp.sum(w1_t, axis=0)

    # Final Linear(100,1) folded through the ResBlock:
    #   out = h @ v1 + relu(h@Wa + ba) @ v2 + c
    wout_t = raw["out_w"].T.astype(jnp.float32)                   # (100, 1)
    v1 = wout_t
    v2 = jnp.dot(raw["res_w2"].T.astype(jnp.float32), wout_t,
                 precision=jax.lax.Precision.HIGHEST)             # (100, 1)
    c = jnp.sum(raw["res_b2"] * raw["out_w"][0]) + raw["out_b"][0]

    return {
        "w_fused": _pad2(w_fused, L_IN, H_PAD).astype(compute_dtype),      # (340,128)
        "b_fused": _pad2(b_fused[None, :], 1, H_PAD).astype(jnp.float32),  # (1,128)
        "wa": _pad2(raw["res_w1"].T, H_PAD, H_PAD).astype(compute_dtype),  # (128,128)
        "ba": _pad2(raw["res_b1"][None, :], 1, H_PAD).astype(jnp.float32), # (1,128)
        "v1": _pad2(v1, H_PAD, 1).astype(compute_dtype),                   # (128,1)
        "v2": _pad2(v2, H_PAD, 1).astype(compute_dtype),                   # (128,1)
        "c": jnp.reshape(c, (1,)).astype(jnp.float32),                     # (1,) SMEM scalar
    }


# ----------------------------------------------------------------------------
# Wrapper
# ----------------------------------------------------------------------------
def classifier_forward(x, kp, *, tile_b=None):
    """x: (B, 340). Returns (B, 1) float32.

    tile_b default: 4096 for bf16, 2048 for f32 (amortizes the ~0.35 us
    per-grid-step overhead; well under the 32 MiB scoped-VMEM default on
    v5e/v6e/v7x, so VMEM is not the binding constraint).  Pass x already in
    the compute dtype (kp['w_fused'].dtype) to avoid an extra HBM round-trip
    for the cast; padding is only applied when B is not a multiple of 128."""
    B = x.shape[0]
    assert x.shape[1] == L_IN
    compute_dtype = kp["w_fused"].dtype

    if tile_b is None:
        tile_b = 4096 if compute_dtype == jnp.bfloat16 else 2048
    tile_b = _round_up(max(tile_b, 128), 128)

    b_pad = _round_up(B, 128)
    tile_b = min(tile_b, b_pad)
    # Keep >= 2 grid steps when the batch allows it (balances v7x's two
    # TensorCores under dimension_semantics=("parallel",); one extra grid step
    # is negligible on single-TC v5e/v6e).
    if b_pad >= 2 * 128:
        tile_b = min(tile_b, max(128, (b_pad // 2) // 128 * 128))
    num_tiles = pl.cdiv(b_pad, tile_b)   # ragged last tile handled by Pallas

    # Minimize wrapper-side materialization of x: cast only if needed, pad
    # only to a multiple of 128 (not tile_b).
    if x.dtype != compute_dtype:
        x = x.astype(compute_dtype)
    if b_pad != B:
        x = jnp.pad(x, ((0, b_pad - B), (0, 0)))
    # NOTE: padded rows produce garbage output rows; they are sliced off below.

    itemsize = jnp.dtype(compute_dtype).itemsize
    weight_bytes = (L_IN * H_PAD + H_PAD * H_PAD + 2 * H_PAD) * itemsize
    cost = pl.CostEstimate(
        flops=2 * b_pad * (L_IN * H_PAD + H_PAD * H_PAD + 2 * H_PAD),
        transcendentals=0,
        bytes_accessed=b_pad * L_IN * itemsize + b_pad * 4 + weight_bytes)

    def resident(shape):
        return pl.BlockSpec(shape, lambda i: (0, 0))  # same block every step -> stays in VMEM

    out = pl.pallas_call(
        classifier_kernel,
        out_shape=jax.ShapeDtypeStruct((b_pad, 1), jnp.float32),
        grid=(num_tiles,),
        in_specs=[
            pl.BlockSpec((tile_b, L_IN), lambda i: (i, 0)),       # x stream (double-buffered)
            resident((L_IN, H_PAD)),                              # w_fused
            resident((1, H_PAD)),                                 # b_fused
            resident((H_PAD, H_PAD)),                             # wa
            resident((1, H_PAD)),                                 # ba
            resident((H_PAD, 1)),                                 # v1
            resident((H_PAD, 1)),                                 # v2
            pl.BlockSpec(memory_space=pltpu.MemorySpace.SMEM),    # c scalar
        ],
        out_specs=pl.BlockSpec((tile_b, 1), lambda i: (i, 0)),    # (TB,1) column per tile
        compiler_params=pltpu.CompilerParams(
            dimension_semantics=("parallel",),                    # v7x: shard batch across TCs
        ),
        cost_estimate=cost,
    )(x, kp["w_fused"], kp["b_fused"], kp["wa"], kp["ba"],
      kp["v1"], kp["v2"], kp["c"])

    return out[:B]


# ----------------------------------------------------------------------------
# Reference (follows the PyTorch layer sequence on raw, unfused params)
# ----------------------------------------------------------------------------
def init_raw_params(key, scale=0.05):
    ks = jax.random.split(key, 10)
    n = lambda k, s: scale * jax.random.normal(k, s, jnp.float32)
    return {
        "conv_w": n(ks[0], (1, 1, K)),   "conv_b": n(ks[1], (1,)),
        "lin1_w": n(ks[2], (H1, L_OUT)), "lin1_b": n(ks[3], (H1,)),
        "res_w1": n(ks[4], (H1, H1)),    "res_b1": n(ks[5], (H1,)),
        "res_w2": n(ks[6], (H1, H1)),    "res_b2": n(ks[7], (H1,)),
        "out_w":  n(ks[8], (1, H1)),     "out_b":  n(ks[9], (1,)),
    }


def reference_forward(x, raw):
    w = raw["conv_w"].reshape(-1)
    b = raw["conv_b"].reshape(())
    idx = jnp.arange(L_OUT)[:, None] + jnp.arange(K)[None, :]      # (320, 21)
    h = jnp.einsum("bjk,k->bj", x[:, idx], w) + b                  # Conv1d + flatten
    h = h @ raw["lin1_w"].T + raw["lin1_b"]                        # Linear(320,100)
    h = jnp.maximum(h, 0.0)
    h = jnp.maximum(h, 0.0)                                        # ReLU, ReLU (as in module)
    r = jnp.maximum(h @ raw["res_w1"].T + raw["res_b1"], 0.0)      # ResBlock
    r = r @ raw["res_w2"].T + raw["res_b2"]
    h = h + r
    return h @ raw["out_w"].T + raw["out_b"]                       # Linear(100,1)


if __name__ == "__main__":
    key = jax.random.PRNGKey(0)
    kx, kparams_key = jax.random.split(key)
    B = 16
    x = jax.random.normal(kx, (B, L_IN), jnp.float32)

    raw = init_raw_params(kparams_key)
    ref = reference_forward(x, raw)

    # f32 path: tight numerical check of the fusion.
    kp32 = prepare_kernel_params(raw, compute_dtype=jnp.float32)
    out32 = jax.block_until_ready(classifier_forward(x, kp32))
    assert out32.shape == (B, 1)
    assert jnp.allclose(out32, ref, atol=1e-3, rtol=1e-3), (out32, ref)

    # bf16 path (default): x arrives pre-cast (no wrapper cast), loose tolerance.
    kp16 = prepare_kernel_params(raw)  # bf16 by default
    out16 = jax.block_until_ready(classifier_forward(x.astype(jnp.bfloat16), kp16))
    assert out16.shape == (B, 1)
    assert jnp.allclose(out16, ref, atol=5e-2, rtol=5e-2), (out16, ref)

    print("KERNEL_OK")
</pallas_src>

<mosaic_0001>
module attributes {stable_mosaic.version = 11 : i64} {
  func.func @classifier_kernel(%arg0: i32, %arg1: memref<128x340xf32, #tpu.memory_space<vmem>>, %arg2: memref<340x128xf32, #tpu.memory_space<vmem>>, %arg3: memref<1x128xf32, #tpu.memory_space<vmem>>, %arg4: memref<128x128xf32, #tpu.memory_space<vmem>>, %arg5: memref<1x128xf32, #tpu.memory_space<vmem>>, %arg6: memref<128x1xf32, #tpu.memory_space<vmem>>, %arg7: memref<128x1xf32, #tpu.memory_space<vmem>>, %arg8: memref<1xf32, #tpu.memory_space<smem>>, %arg9: memref<128x1xf32, #tpu.memory_space<vmem>>) attributes {dimension_semantics = [#tpu.dimension_semantics<parallel>], iteration_bounds = array<i64: 1>, scalar_prefetch = 0 : i64, scratch_operands = 0 : i64, tpu.core_type = #tpu.core_type<tc>, window_params = [{transform_indices = @transform_0, window_bounds = array<i64: 128, 340>}, {pipeline_mode = #tpu.pipeline_mode<synchronous>, transform_indices = @transform_1, window_bounds = array<i64: 340, 128>}, {pipeline_mode = #tpu.pipeline_mode<synchronous>, transform_indices = @transform_2, window_bounds = array<i64: 1, 128>}, {pipeline_mode = #tpu.pipeline_mode<synchronous>, transform_indices = @transform_3, window_bounds = array<i64: 128, 128>}, {pipeline_mode = #tpu.pipeline_mode<synchronous>, transform_indices = @transform_4, window_bounds = array<i64: 1, 128>}, {pipeline_mode = #tpu.pipeline_mode<synchronous>, transform_indices = @transform_5, window_bounds = array<i64: 128, 1>}, {pipeline_mode = #tpu.pipeline_mode<synchronous>, transform_indices = @transform_6, window_bounds = array<i64: 128, 1>}, {transform_indices = @transform_7, window_bounds = array<i64: 1>}, {transform_indices = @transform_8, window_bounds = array<i64: 128, 1>}]} {
    %c0 = arith.constant 0 : index
    %c0_0 = arith.constant 0 : index
    %0 = vector.load %arg1[%c0, %c0_0] : memref<128x340xf32, #tpu.memory_space<vmem>>, vector<128x340xf32>
    %c0_1 = arith.constant 0 : index
    %c0_2 = arith.constant 0 : index
    %1 = vector.load %arg2[%c0_1, %c0_2] : memref<340x128xf32, #tpu.memory_space<vmem>>, vector<340x128xf32>
    %cst = arith.constant dense<0.000000e+00> : vector<128x128xf32>
    %2 = tpu.matmul %0, %1, %cst {dimension_numbers = #tpu.dot_dimension_numbers<[1], [0], [0], [1], [0, 0, 1, 1], [], []>} : vector<128x340xf32>, vector<340x128xf32>, vector<128x128xf32> -> vector<128x128xf32>
    %c0_3 = arith.constant 0 : index
    %c0_4 = arith.constant 0 : index
    %3 = vector.load %arg3[%c0_3, %c0_4] : memref<1x128xf32, #tpu.memory_space<vmem>>, vector<1x128xf32>
    %4 = vector.broadcast %3 : vector<1x128xf32> to vector<128x128xf32>
    %5 = arith.addf %2, %4 : vector<128x128xf32>
    %cst_5 = arith.constant 0.000000e+00 : f32
    %6 = vector.broadcast %cst_5 : f32 to vector<128x128xf32>
    %7 = arith.maximumf %5, %6 : vector<128x128xf32>
    %c0_6 = arith.constant 0 : index
    %c0_7 = arith.constant 0 : index
    %8 = vector.load %arg4[%c0_6, %c0_7] : memref<128x128xf32, #tpu.memory_space<vmem>>, vector<128x128xf32>
    %cst_8 = arith.constant dense<0.000000e+00> : vector<128x128xf32>
    %9 = tpu.matmul %7, %8, %cst_8 {dimension_numbers = #tpu.dot_dimension_numbers<[1], [0], [0], [1], [0, 0, 1, 1], [], []>} : vector<128x128xf32>, vector<128x128xf32>, vector<128x128xf32> -> vector<128x128xf32>
    %c0_9 = arith.constant 0 : index
    %c0_10 = arith.constant 0 : index
    %10 = vector.load %arg5[%c0_9, %c0_10] : memref<1x128xf32, #tpu.memory_space<vmem>>, vector<1x128xf32>
    %11 = vector.broadcast %10 : vector<1x128xf32> to vector<128x128xf32>
    %12 = arith.addf %9, %11 : vector<128x128xf32>
    %cst_11 = arith.constant 0.000000e+00 : f32
    %13 = vector.broadcast %cst_11 : f32 to vector<128x128xf32>
    %14 = arith.maximumf %12, %13 : vector<128x128xf32>
    %c0_12 = arith.constant 0 : index
    %c0_13 = arith.constant 0 : index
    %15 = vector.load %arg6[%c0_12, %c0_13] : memref<128x1xf32, #tpu.memory_space<vmem>>, vector<128x1xf32>
    %cst_14 = arith.constant dense<0.000000e+00> : vector<128x1xf32>
    %16 = tpu.matmul %7, %15, %cst_14 {dimension_numbers = #tpu.dot_dimension_numbers<[1], [0], [0], [1], [0, 0, 1, 1], [], []>} : vector<128x128xf32>, vector<128x1xf32>, vector<128x1xf32> -> vector<128x1xf32>
    %c0_15 = arith.constant 0 : index
    %c0_16 = arith.constant 0 : index
    %17 = vector.load %arg7[%c0_15, %c0_16] : memref<128x1xf32, #tpu.memory_space<vmem>>, vector<128x1xf32>
    %cst_17 = arith.constant dense<0.000000e+00> : vector<128x1xf32>
    %18 = tpu.matmul %14, %17, %cst_17 {dimension_numbers = #tpu.dot_dimension_numbers<[1], [0], [0], [1], [0, 0, 1, 1], [], []>} : vector<128x128xf32>, vector<128x1xf32>, vector<128x1xf32> -> vector<128x1xf32>
    %19 = arith.addf %16, %18 : vector<128x1xf32>
    %c0_18 = arith.constant 0 : index
    %20 = memref.load %arg8[%c0_18] : memref<1xf32, #tpu.memory_space<smem>>
    %21 = vector.broadcast %20 : f32 to vector<128x1xf32>
    %22 = arith.addf %19, %21 : vector<128x1xf32>
    %c0_19 = arith.constant 0 : index
    %c0_20 = arith.constant 0 : index
    %23 = vector.load %arg9[%c0_19, %c0_20] : memref<128x1xf32, #tpu.memory_space<vmem>>, vector<128x1xf32>
    tpu.vector_store %arg9[%c0_19, %c0_20], %22 {strides = array<i32>} : memref<128x1xf32, #tpu.memory_space<vmem>>, vector<128x1xf32>,
    return
  }
  func.func @transform_0(%arg0: i32) -> (i32, i32) {
    %c0_i32 = arith.constant 0 : i32
    %c0_i32_0 = arith.constant 0 : i32
    return %arg0, %c0_i32 : i32, i32
  }
  func.func @transform_1(%arg0: i32) -> (i32, i32) {
    %c0_i32 = arith.constant 0 : i32
    %c0_i32_0 = arith.constant 0 : i32
    %c0_i32_1 = arith.constant 0 : i32
    return %c0_i32, %c0_i32_0 : i32, i32
  }
  func.func @transform_2(%arg0: i32) -> (i32, i32) {
    %c0_i32 = arith.constant 0 : i32
    %c0_i32_0 = arith.constant 0 : i32
    %c0_i32_1 = arith.constant 0 : i32
    return %c0_i32, %c0_i32_0 : i32, i32
  }
  func.func @transform_3(%arg0: i32) -> (i32, i32) {
    %c0_i32 = arith.constant 0 : i32
    %c0_i32_0 = arith.constant 0 : i32
    %c0_i32_1 = arith.constant 0 : i32
    return %c0_i32, %c0_i32_0 : i32, i32
  }
  func.func @transform_4(%arg0: i32) -> (i32, i32) {
    %c0_i32 = arith.constant 0 : i32
    %c0_i32_0 = arith.constant 0 : i32
    %c0_i32_1 = arith.constant 0 : i32
    return %c0_i32, %c0_i32_0 : i32, i32
  }
  func.func @transform_5(%arg0: i32) -> (i32, i32) {
    %c0_i32 = arith.constant 0 : i32
    %c0_i32_0 = arith.constant 0 : i32
    %c0_i32_1 = arith.constant 0 : i32
    return %c0_i32, %c0_i32_0 : i32, i32
  }
  func.func @transform_6(%arg0: i32) -> (i32, i32) {
    %c0_i32 = arith.constant 0 : i32
    %c0_i32_0 = arith.constant 0 : i32
    %c0_i32_1 = arith.constant 0 : i32
    return %c0_i32, %c0_i32_0 : i32, i32
  }
  func.func @transform_7(%arg0: i32) -> i32 {
    %c0_i32 = arith.constant 0 : i32
    %c0_i32_0 = arith.constant 0 : i32
    return %c0_i32 : i32
  }
  func.func @transform_8(%arg0: i32) -> (i32, i32) {
    %c0_i32 = arith.constant 0 : i32
    %c0_i32_0 = arith.constant 0 : i32
    return %arg0, %c0_i32 : i32, i32
  }
}

</mosaic_0001>

<llo_original>
// kernel: tpu_custom_call.1
$region0: #{tpu_custom_call.1}
  #allocation0 [shape = 'u32[]', space=smem, size = 0x4, offset = 0x4, fixed_abs, tag = 'smem constant byte address 0x4 - core index']
  #allocation1 [shape = 'u32[144,128]{1,0:T(1,128)}', space=vmem, size = 0x12000, scoped, tag = 'internal scratch']
  #allocation2 [shape = 'f32[1]{0:T(128)S(6)}', space=smem, size = 0x200, scoped, tag = 'scoped memory for tpu_custom_call.1']
  %s0 = inlined_call_operand.vmem [shape: f32[128,340], index: 0, kind: input, shape index: {}]
  %s1 = inlined_call_operand.vmem [shape: f32[340,128], index: 1, kind: input, shape index: {}]
  %s2 = inlined_call_operand.vmem [shape: f32[1,128], index: 2, kind: input, shape index: {}]
  %s3 = inlined_call_operand.vmem [shape: f32[128,128], index: 3, kind: input, shape index: {}]
  %s4 = inlined_call_operand.vmem [shape: f32[1,128], index: 4, kind: input, shape index: {}]
  %s5 = inlined_call_operand.vmem [shape: f32[128,1], index: 5, kind: input, shape index: {}]
  %s6 = inlined_call_operand.vmem [shape: f32[128,1], index: 6, kind: input, shape index: {}]
  %s7 = inlined_call_operand.<no memory space> [shape: f32[1], index: 7, kind: input, shape index: {}]
  %s8 = inlined_call_operand.vmem [shape: f32[128,1], index: 8, kind: output, shape index: {}]
  %s9 = sld [smem:[#allocation0]]
  $region42: #{tpu_custom_call.1} parent=0
    _
  %s11 = ssub.s32 1, %s9
  %s12 = scalar_select 0, %s11, %s9
  %13 = sst [smem:[#allocation2]] %s7
  // Predicated region
  $region2: #{tpu_custom_call.1} parent=0 // pred_check
    _
  $region3: #{tpu_custom_call.1} parent=0 // pred_check_branch
    %15 = sbr.rel (0) target = $region5
  $region4: #{tpu_custom_call.1} parent=0 // pred_region
    _
  $region5: #{tpu_custom_call.1} parent=0 // pred_fallthru
    _
  // Predicated region
  $region6: #{tpu_custom_call.1} parent=0 // pred_check
    _
  $region7: #{tpu_custom_call.1} parent=0 // pred_check_branch
    %17 = sbr.rel (0) target = $region9
  $region8: #{tpu_custom_call.1} parent=0 // pred_region
    _
  $region9: #{tpu_custom_call.1} parent=0 // pred_fallthru
    _
  // Predicated region
  $region10: #{tpu_custom_call.1} parent=0 // pred_check
    _
  $region11: #{tpu_custom_call.1} parent=0 // pred_check_branch
    %19 = sbr.rel (0) target = $region13
  $region12: #{tpu_custom_call.1} parent=0 // pred_region
    _
  $region13: #{tpu_custom_call.1} parent=0 // pred_fallthru
    _
  // Predicated region
  $region14: #{tpu_custom_call.1} parent=0 // pred_check
    _
  $region15: #{tpu_custom_call.1} parent=0 // pred_check_branch
    %21 = sbr.rel (0) target = $region17
  $region16: #{tpu_custom_call.1} parent=0 // pred_region
    _
  $region17: #{tpu_custom_call.1} parent=0 // pred_fallthru
    _
  // Predicated region
  $region18: #{tpu_custom_call.1} parent=0 // pred_check
    _
  $region19: #{tpu_custom_call.1} parent=0 // pred_check_branch
    %23 = sbr.rel (0) target = $region21
  $region20: #{tpu_custom_call.1} parent=0 // pred_region
    _
  $region21: #{tpu_custom_call.1} parent=0 // pred_fallthru
    _
  // Predicated region
  $region22: #{tpu_custom_call.1} parent=0 // pred_check
    _
  $region23: #{tpu_custom_call.1} parent=0 // pred_check_branch
    %25 = sbr.rel (0) target = $region25
  $region24: #{tpu_custom_call.1} parent=0 // pred_region
    _
  $region25: #{tpu_custom_call.1} parent=0 // pred_fallthru
    _
  // Predicated region
  $region26: #{tpu_custom_call.1} parent=0 // pred_check
    _
  $region27: #{tpu_custom_call.1} parent=0 // pred_check_branch
    %27 = sbr.rel (0) target = $region29
  $region28: #{tpu_custom_call.1} parent=0 // pred_region
    _
  $region29: #{tpu_custom_call.1} parent=0 // pred_fallthru
    _
  // Predicated region
  $region30: #{tpu_custom_call.1} parent=0 // pred_check
    _
  $region31: #{tpu_custom_call.1} parent=0 // pred_check_branch
    %29 = sbr.rel (0) target = $region33
  $region32: #{tpu_custom_call.1} parent=0 // pred_region
    _
  $region33: #{tpu_custom_call.1} parent=0 // pred_fallthru
    _
  %v30 = vld [vmem:[%s0] sm:$0xff]
  %v31 = vld [vmem:[%s0 + $0x8] sm:$0xff]
  %v32 = vld [vmem:[%s0 + $0x10] sm:$0xff]
  %v33 = vld [vmem:[%s0 + $0x18] sm:$0xff]
  %v34 = vld [vmem:[%s0 + $0x20] sm:$0xff]
  %v35 = vld [vmem:[%s0 + $0x28] sm:$0xff]
  %v36 = vld [vmem:[%s0 + $0x30] sm:$0xff]
  %v37 = vld [vmem:[%s0 + $0x38] sm:$0xff]
  %v38 = vld [vmem:[%s0 + $0x40] sm:$0xff]
  %v39 = vld [vmem:[%s0 + $0x48] sm:$0xff]
  %v40 = vld [vmem:[%s0 + $0x50] sm:$0xff]
  %v41 = vld [vmem:[%s0 + $0x58] sm:$0xff]
  %v42 = vld [vmem:[%s0 + $0x60] sm:$0xff]
  %v43 = vld [vmem:[%s0 + $0x68] sm:$0xff]
  %v44 = vld [vmem:[%s0 + $0x70] sm:$0xff]
  %v45 = vld [vmem:[%s0 + $0x78] sm:$0xff]
  %v46 = vld [vmem:[%s0 + $0x80] sm:$0xff]
  %v47 = vld [vmem:[%s0 + $0x88] sm:$0xff]
  %v48 = vld [vmem:[%s0 + $0x90] sm:$0xff]
  %v49 = vld [vmem:[%s0 + $0x98] sm:$0xff]
  %v50 = vld [vmem:[%s0 + $0xa0] sm:$0xff]
  %v51 = vld [vmem:[%s0 + $0xa8] sm:$0xff]
  %v52 = vld [vmem:[%s0 + $0xb0] sm:$0xff]
  %v53 = vld [vmem:[%s0 + $0xb8] sm:$0xff]
  %v54 = vld [vmem:[%s0 + $0xc0] sm:$0xff]
  %v55 = vld [vmem:[%s0 + $0xc8] sm:$0xff]
  %v56 = vld [vmem:[%s0 + $0xd0] sm:$0xff]
  %v57 = vld [vmem:[%s0 + $0xd8] sm:$0xff]
  %v58 = vld [vmem:[%s0 + $0xe0] sm:$0xff]
  %v59 = vld [vmem:[%s0 + $0xe8] sm:$0xff]
  %v60 = vld [vmem:[%s0 + $0xf0] sm:$0xff]
  %v61 = vld [vmem:[%s0 + $0xf8] sm:$0xff]
  %v62 = vld [vmem:[%s0 + $0x100] sm:$0xff]
  %v63 = vld [vmem:[%s0 + $0x108] sm:$0xff]
  %v64 = vld [vmem:[%s0 + $0x110] sm:$0xff]
  %v65 = vld [vmem:[%s0 + $0x118] sm:$0xff]
  %v66 = vld [vmem:[%s0 + $0x120] sm:$0xff]
  %v67 = vld [vmem:[%s0 + $0x128] sm:$0xff]
  %v68 = vld [vmem:[%s0 + $0x130] sm:$0xff]
  %v69 = vld [vmem:[%s0 + $0x138] sm:$0xff]
  %v70 = vld [vmem:[%s0 + $0x140] sm:$0xff]
  %v71 = vld [vmem:[%s0 + $0x148] sm:$0xff]
  %v72 = vld [vmem:[%s0 + $0x150] sm:$0xff]
  %v73 = vld [vmem:[%s0 + $0x158] sm:$0xff]
  %v74 = vld [vmem:[%s0 + $0x160] sm:$0xff]
  %v75 = vld [vmem:[%s0 + $0x168] sm:$0xff]
  %v76 = vld [vmem:[%s0 + $0x170] sm:$0xff]
  %v77 = vld [vmem:[%s0 + $0x178] sm:$0xff]
  %v78 = vld [vmem:[%s1] sm:$0xff]
  %v79 = vld [vmem:[%s1 + $0x8] sm:$0xff]
  %v80 = vld [vmem:[%s1 + $0x10] sm:$0xff]
  %v81 = vld [vmem:[%s1 + $0x18] sm:$0xff]
  %v82 = vld [vmem:[%s1 + $0x20] sm:$0xff]
  %v83 = vld [vmem:[%s1 + $0x28] sm:$0xff]
  %v84 = vld [vmem:[%s1 + $0x30] sm:$0xff]
  %v85 = vld [vmem:[%s1 + $0x38] sm:$0xff]
  %v86 = vld [vmem:[%s1 + $0x40] sm:$0xff]
  %v87 = vld [vmem:[%s1 + $0x48] sm:$0xff]
  %v88 = vld [vmem:[%s1 + $0x50] sm:$0xff]
  %v89 = vld [vmem:[%s1 + $0x58] sm:$0xff]
  %v90 = vld [vmem:[%s1 + $0x60] sm:$0xff]
  %v91 = vld [vmem:[%s1 + $0x68] sm:$0xff]
  %v92 = vld [vmem:[%s1 + $0x70] sm:$0xff]
  %v93 = vld [vmem:[%s1 + $0x78] sm:$0xff]
  %v94 = vld [vmem:[%s1 + $0x80] sm:$0xff]
  %v95 = vld [vmem:[%s1 + $0x88] sm:$0xff]
  %v96 = vld [vmem:[%s1 + $0x90] sm:$0xff]
  %v97 = vld [vmem:[%s1 + $0x98] sm:$0xff]
  %v98 = vld [vmem:[%s1 + $0xa0] sm:$0xff]
  %v99 = vld [vmem:[%s1 + $0xa8] sm:$0xff]
  %v100 = vld [vmem:[%s1 + $0xb0] sm:$0xff]
  %v101 = vld [vmem:[%s1 + $0xb8] sm:$0xff]
  %v102 = vld [vmem:[%s1 + $0xc0] sm:$0xff]
  %v103 = vld [vmem:[%s1 + $0xc8] sm:$0xff]
  %v104 = vld [vmem:[%s1 + $0xd0] sm:$0xff]
  %v105 = vld [vmem:[%s1 + $0xd8] sm:$0xff]
  %v106 = vld [vmem:[%s1 + $0xe0] sm:$0xff]
  %v107 = vld [vmem:[%s1 + $0xe8] sm:$0xff]
  %v108 = vld [vmem:[%s1 + $0xf0] sm:$0xff]
  %v109 = vld [vmem:[%s1 + $0xf8] sm:$0xff]
  %v110 = vld [vmem:[%s1 + $0x100] sm:$0xff]
  %v111 = vld [vmem:[%s1 + $0x108] sm:$0xff]
  %v112 = vld [vmem:[%s1 + $0x110] sm:$0xff]
  %v113 = vld [vmem:[%s1 + $0x118] sm:$0xff]
  %v114 = vld [vmem:[%s1 + $0x120] sm:$0xff]
  %v115 = vld [vmem:[%s1 + $0x128] sm:$0xff]
  %v116 = vld [vmem:[%s1 + $0x130] sm:$0xff]
  %v117 = vld [vmem:[%s1 + $0x138] sm:$0xff]
  %v118 = vld [vmem:[%s1 + $0x140] sm:$0xff]
  %v119 = vld [vmem:[%s1 + $0x148] sm:$0xff]
  %v120 = vld [vmem:[%s1 + $0x150] sm:$0xf]
  %v121 = vld [vmem:[%s2] sm:$0x1]
  %v123 = vlaneseq
  %v124 = vshrl.u32 %v123, 7
  %v125 = vsub.s32 0, %v124
  %v126 = vrot.slane %v121, %v125
  %vm128 = vcmask 687104
  %v130 = vsel %vm128, %v32, 0
  %v133 = vsel %vm128, %v35, 0
  %v136 = vsel %vm128, %v38, 0
  %v139 = vsel %vm128, %v41, 0
  %v142 = vsel %vm128, %v44, 0
  %v145 = vsel %vm128, %v47, 0
  %v148 = vsel %vm128, %v50, 0
  %v151 = vsel %vm128, %v53, 0
  %v154 = vsel %vm128, %v56, 0
  %v157 = vsel %vm128, %v59, 0
  %v160 = vsel %vm128, %v62, 0
  %v163 = vsel %vm128, %v65, 0
  %v166 = vsel %vm128, %v68, 0
  %v169 = vsel %vm128, %v71, 0
  %v172 = vsel %vm128, %v74, 0
  %v175 = vsel %vm128, %v77, 0
  %vm177 = vcmask 1043456
  %v179 = vsel %vm177, %v120, 0
  %181 = vmatprep.subr.mxu0 0.0
  %182 = vmatpush1.msra.mxu0 %v78
  %183 = vmatprep.subr.mxu0 0.0
  %184 = vmatpush1.msra.mxu0 %v79
  %185 = vmatprep.subr.mxu0 0.0
  %186 = vmatpush1.msra.mxu0 %v80
  %187 = vmatprep.subr.mxu0 0.0
  %188 = vmatpush1.msra.mxu0 %v81
  %189 = vmatprep.subr.mxu0 0.0
  %190 = vmatpush1.msra.mxu0 %v82
  %191 = vmatprep.subr.mxu0 0.0
  %192 = vmatpush1.msra.mxu0 %v83
  %193 = vmatprep.subr.mxu0 0.0
  %194 = vmatpush1.msra.mxu0 %v84
  %195 = vmatprep.subr.mxu0 0.0
  %196 = vmatpush1.msra.mxu0 %v85
  %197 = vmatprep.subr.mxu0 0.0
  %198 = vmatpush1.msra.mxu0 %v86
  %199 = vmatprep.subr.mxu0 0.0
  %200 = vmatpush1.msra.mxu0 %v87
  %201 = vmatprep.subr.mxu0 0.0
  %202 = vmatpush1.msra.mxu0 %v88
  %203 = vmatprep.subr.mxu0 0.0
  %204 = vmatpush1.msra.mxu0 %v89
  %205 = vmatprep.subr.mxu0 0.0
  %206 = vmatpush1.msra.mxu0 %v90
  %207 = vmatprep.subr.mxu0 0.0
  %208 = vmatpush1.msra.mxu0 %v91
  %209 = vmatprep.subr.mxu0 0.0
  %210 = vmatpush1.msra.mxu0 %v92
  %211 = vmatprep.subr.mxu0 0.0
  %212 = vmatpush1.msra.mxu0 %v93
  %213 = vmatprep.subr.mxu0 0.0
  %214 = vmatpush1.msra.mxu0 %v94
  %215 = vmatprep.subr.mxu0 0.0
  %216 = vmatpush1.msra.mxu0 %v95
  %217 = vmatprep.subr.mxu0 0.0
  %218 = vmatpush1.msra.mxu0 %v96
  %219 = vmatprep.subr.mxu0 0.0
  %220 = vmatpush1.msra.mxu0 %v97
  %221 = vmatprep.subr.mxu0 0.0
  %222 = vmatpush1.msra.mxu0 %v98
  %223 = vmatprep.subr.mxu0 0.0
  %224 = vmatpush1.msra.mxu0 %v99
  %225 = vmatprep.subr.mxu0 0.0
  %226 = vmatpush1.msra.mxu0 %v100
  %227 = vmatprep.subr.mxu0 0.0
  %228 = vmatpush1.msra.mxu0 %v101
  %229 = vmatprep.subr.mxu0 0.0
  %230 = vmatpush1.msra.mxu0 %v102
  %231 = vmatprep.subr.mxu0 0.0
  %232 = vmatpush1.msra.mxu0 %v103
  %233 = vmatprep.subr.mxu0 0.0
  %234 = vmatpush1.msra.mxu0 %v104
  %235 = vmatprep.subr.mxu0 0.0
  %236 = vmatpush1.msra.mxu0 %v105
  %237 = vmatprep.subr.mxu0 0.0
  %238 = vmatpush1.msra.mxu0 %v106
  %239 = vmatprep.subr.mxu0 0.0
  %240 = vmatpush1.msra.mxu0 %v107
  %241 = vmatprep.subr.mxu0 0.0
  %242 = vmatpush1.msra.mxu0 %v108
  %243 = vmatprep.subr.mxu0 0.0
  %244 = vmatpush1.msra.mxu0 %v109
  %245 = vmatprep.mubr.f32.mxu0 %v31
  %246 = vmatmul.mubr.f32.gmra.mrb[0].mxu0 %v30
  %v247 = vpop.f32.mrb[0].mxu0
  %v248 = vadd.f32 %v126, %v247
  %v249 = vpop.f32.mrb[0].mxu0
  %250 = vmatprep.mubr.f32.mxu0 %v34
  %251 = vmatmul.mubr.f32.gmra.mrb[0].mxu0 %v33
  %v252 = vpop.f32.mrb[0].mxu0
  %v253 = vadd.f32 %v126, %v252
  %v254 = vpop.f32.mrb[0].mxu0
  %255 = vmatprep.mubr.f32.mxu0 %v37
  %256 = vmatmul.mubr.f32.gmra.mrb[0].mxu0 %v36
  %v257 = vpop.f32.mrb[0].mxu0
  %v258 = vadd.f32 %v126, %v257
  %v259 = vpop.f32.mrb[0].mxu0
  %260 = vmatprep.mubr.f32.mxu0 %v40
  %261 = vmatmul.mubr.f32.gmra.mrb[0].mxu0 %v39
  %v262 = vpop.f32.mrb[0].mxu0
  %v263 = vadd.f32 %v126, %v262
  %v264 = vpop.f32.mrb[0].mxu0
  %265 = vmatprep.mubr.f32.mxu0 %v43
  %266 = vmatmul.mubr.f32.gmra.mrb[0].mxu0 %v42
  %v267 = vpop.f32.mrb[0].mxu0
  %v268 = vadd.f32 %v126, %v267
  %v269 = vpop.f32.mrb[0].mxu0
  %270 = vmatprep.mubr.f32.mxu0 %v46
  %271 = vmatmul.mubr.f32.gmra.mrb[0].mxu0 %v45
  %v272 = vpop.f32.mrb[0].mxu0
  %v273 = vadd.f32 %v126, %v272
  %v274 = vpop.f32.mrb[0].mxu0
  %275 = vmatprep.mubr.f32.mxu0 %v49
  %276 = vmatmul.mubr.f32.gmra.mrb[0].mxu0 %v48
  %v277 = vpop.f32.mrb[0].mxu0
  %v278 = vadd.f32 %v126, %v277
  %v279 = vpop.f32.mrb[0].mxu0
  %280 = vmatprep.mubr.f32.mxu0 %v52
  %281 = vmatmul.mubr.f32.gmra.mrb[0].mxu0 %v51
  %v282 = vpop.f32.mrb[0].mxu0
  %v283 = vadd.f32 %v126, %v282
  %v284 = vpop.f32.mrb[0].mxu0
  %285 = vmatprep.mubr.f32.mxu0 %v55
  %286 = vmatmul.mubr.f32.gmra.mrb[0].mxu0 %v54
  %v287 = vpop.f32.mrb[0].mxu0
  %v288 = vadd.f32 %v126, %v287
  %v289 = vpop.f32.mrb[0].mxu0
  %290 = vmatprep.mubr.f32.mxu0 %v58
  %291 = vmatmul.mubr.f32.gmra.mrb[0].mxu0 %v57
  %v292 = vpop.f32.mrb[0].mxu0
  %v293 = vadd.f32 %v126, %v292
  %v294 = vpop.f32.mrb[0].mxu0
  %295 = vmatprep.mubr.f32.mxu0 %v61
  %296 = vmatmul.mubr.f32.gmra.mrb[0].mxu0 %v60
  %v297 = vpop.f32.mrb[0].mxu0
  %v298 = vadd.f32 %v126, %v297
  %v299 = vpop.f32.mrb[0].mxu0
  %300 = vmatprep.mubr.f32.mxu0 %v64
  %301 = vmatmul.mubr.f32.gmra.mrb[0].mxu0 %v63
  %v302 = vpop.f32.mrb[0].mxu0
  %v303 = vadd.f32 %v126, %v302
  %v304 = vpop.f32.mrb[0].mxu0
  %305 = vmatprep.mubr.f32.mxu0 %v67
  %306 = vmatmul.mubr.f32.gmra.mrb[0].mxu0 %v66
  %v307 = vpop.f32.mrb[0].mxu0
  %v308 = vadd.f32 %v126, %v307
  %v309 = vpop.f32.mrb[0].mxu0
  %310 = vmatprep.mubr.f32.mxu0 %v70
  %311 = vmatmul.mubr.f32.gmra.mrb[0].mxu0 %v69
  %v312 = vpop.f32.mrb[0].mxu0
  %v313 = vadd.f32 %v126, %v312
  %v314 = vpop.f32.mrb[0].mxu0
  %315 = vmatprep.mubr.f32.mxu0 %v73
  %316 = vmatmul.mubr.f32.gmra.mrb[0].mxu0 %v72
  %v317 = vpop.f32.mrb[0].mxu0
  %v318 = vadd.f32 %v126, %v317
  %v319 = vpop.f32.mrb[0].mxu0
  %320 = vmatprep.mubr.f32.mxu0 %v76
  %321 = vmatmul.mubr.f32.gmra.mrb[0].mxu0 %v75
  %v322 = vpop.f32.mrb[0].mxu0
  %v323 = vadd.f32 %v126, %v322
  %v324 = vpop.f32.mrb[0].mxu0
  %325 = vdwg.mxu0
  %326 = vmatprep.subr.mxu0 0.0
  %327 = vmatpush1.msra.mxu0 %v110
  %328 = vmatprep.subr.mxu0 0.0
  %329 = vmatpush1.msra.mxu0 %v111
  %330 = vmatprep.subr.mxu0 0.0
  %331 = vmatpush1.msra.mxu0 %v112
  %332 = vmatprep.subr.mxu0 0.0
  %333 = vmatpush1.msra.mxu0 %v113
  %334 = vmatprep.subr.mxu0 0.0
  %335 = vmatpush1.msra.mxu0 %v114
  %336 = vmatprep.subr.mxu0 0.0
  %337 = vmatpush1.msra.mxu0 %v115
  %338 = vmatprep.subr.mxu0 0.0
  %339 = vmatpush1.msra.mxu0 %v116
  %340 = vmatprep.subr.mxu0 0.0
  %341 = vmatpush1.msra.mxu0 %v117
  %342 = vmatprep.subr.mxu0 0.0
  %343 = vmatpush1.msra.mxu0 %v118
  %344 = vmatprep.subr.mxu0 0.0
  %345 = vmatpush1.msra.mxu0 %v119
  %346 = vmatprep.subr.mxu0 0.0
  %347 = vmatpush1.msra.mxu0 %v179
  %348 = vmatprep.subr.mxu0 0.0
  %349 = vmatpush1.msra.mxu0 0.0
  %350 = vmatprep.subr.mxu0 0.0
  %351 = vmatpush1.msra.mxu0 0.0
  %352 = vmatprep.subr.mxu0 0.0
  %353 = vmatpush1.msra.mxu0 0.0
  %354 = vmatprep.subr.mxu0 0.0
  %355 = vmatpush1.msra.mxu0 0.0
  %356 = vmatprep.subr.mxu0 0.0
  %357 = vmatpush1.msra.mxu0 0.0
  %358 = vmatprep.subr.mxu0 0.0
  %359 = vmatpush1.msra.mxu0 0.0
  %360 = vmatprep.subr.mxu0 0.0
  %361 = vmatpush1.msra.mxu0 0.0
  %362 = vmatprep.subr.mxu0 0.0
  %363 = vmatpush1.msra.mxu0 0.0
  %364 = vmatprep.subr.mxu0 0.0
  %365 = vmatpush1.msra.mxu0 0.0
  %366 = vmatprep.subr.mxu0 0.0
  %367 = vmatpush1.msra.mxu0 0.0
  %368 = vmatprep.subr.mxu0 0.0
  %369 = vmatpush1.msra.mxu0 0.0
  %370 = vmatprep.subr.mxu0 0.0
  %371 = vmatpush1.msra.mxu0 0.0
  %372 = vmatprep.subr.mxu0 0.0
  %373 = vmatpush1.msra.mxu0 0.0
  %374 = vmatprep.subr.mxu0 0.0
  %375 = vmatpush1.msra.mxu0 0.0
  %376 = vmatprep.subr.mxu0 0.0
  %377 = vmatpush1.msra.mxu0 0.0
  %378 = vmatprep.subr.mxu0 0.0
  %379 = vmatpush1.msra.mxu0 0.0
  %380 = vmatprep.subr.mxu0 0.0
  %381 = vmatpush1.msra.mxu0 0.0
  %382 = vmatprep.subr.mxu0 0.0
  %383 = vmatpush1.msra.mxu0 0.0
  %384 = vmatprep.subr.mxu0 0.0
  %385 = vmatpush1.msra.mxu0 0.0
  %386 = vmatprep.subr.mxu0 0.0
  %387 = vmatpush1.msra.mxu0 0.0
  %388 = vmatprep.subr.mxu0 0.0
  %389 = vmatpush1.msra.mxu0 0.0
  %390 = vmatprep.mubr.f32.mxu0 0.0
  %391 = vmatmul.mubr.f32.gmra.mrb[0].mxu0 %v130
  %v392 = vpop.f32.mrb[0].mxu0
  %v393 = vadd.f32 %v248, %v392
  %v394 = vpop.f32.mrb[0].mxu0
  %395 = vmatprep.mubr.f32.mxu0 0.0
  %396 = vmatmul.mubr.f32.gmra.mrb[0].mxu0 %v133
  %v397 = vpop.f32.mrb[0].mxu0
  %v398 = vadd.f32 %v253, %v397
  %v399 = vpop.f32.mrb[0].mxu0
  %400 = vmatprep.mubr.f32.mxu0 0.0
  %401 = vmatmul.mubr.f32.gmra.mrb[0].mxu0 %v136
  %v402 = vpop.f32.mrb[0].mxu0
  %v403 = vadd.f32 %v258, %v402
  %v404 = vpop.f32.mrb[0].mxu0
  %405 = vmatprep.mubr.f32.mxu0 0.0
  %406 = vmatmul.mubr.f32.gmra.mrb[0].mxu0 %v139
  %v407 = vpop.f32.mrb[0].mxu0
  %v408 = vadd.f32 %v263, %v407
  %v409 = vpop.f32.mrb[0].mxu0
  %410 = vmatprep.mubr.f32.mxu0 0.0
  %411 = vmatmul.mubr.f32.gmra.mrb[0].mxu0 %v142
  %v412 = vpop.f32.mrb[0].mxu0
  %v413 = vadd.f32 %v268, %v412
  %v414 = vpop.f32.mrb[0].mxu0
  %415 = vmatprep.mubr.f32.mxu0 0.0
  %416 = vmatmul.mubr.f32.gmra.mrb[0].mxu0 %v145
  %v417 = vpop.f32.mrb[0].mxu0
  %v418 = vadd.f32 %v273, %v417
  %v419 = vpop.f32.mrb[0].mxu0
  %420 = vmatprep.mubr.f32.mxu0 0.0
  %421 = vmatmul.mubr.f32.gmra.mrb[0].mxu0 %v148
  %v422 = vpop.f32.mrb[0].mxu0
  %v423 = vadd.f32 %v278, %v422
  %v424 = vpop.f32.mrb[0].mxu0
  %425 = vmatprep.mubr.f32.mxu0 0.0
  %426 = vmatmul.mubr.f32.gmra.mrb[0].mxu0 %v151
  %v427 = vpop.f32.mrb[0].mxu0
  %v428 = vadd.f32 %v283, %v427
  %v429 = vpop.f32.mrb[0].mxu0
  %430 = vmatprep.mubr.f32.mxu0 0.0
  %431 = vmatmul.mubr.f32.gmra.mrb[0].mxu0 %v154
  %v432 = vpop.f32.mrb[0].mxu0
  %v433 = vadd.f32 %v288, %v432
  %v434 = vpop.f32.mrb[0].mxu0
  %435 = vmatprep.mubr.f32.mxu0 0.0
  %436 = vmatmul.mubr.f32.gmra.mrb[0].mxu0 %v157
  %v437 = vpop.f32.mrb[0].mxu0
  %v438 = vadd.f32 %v293, %v437
  %v439 = vpop.f32.mrb[0].mxu0
  %440 = vmatprep.mubr.f32.mxu0 0.0
  %441 = vmatmul.mubr.f32.gmra.mrb[0].mxu0 %v160
  %v442 = vpop.f32.mrb[0].mxu0
  %v443 = vadd.f32 %v298, %v442
  %v444 = vpop.f32.mrb[0].mxu0
  %445 = vmatprep.mubr.f32.mxu0 0.0
  %446 = vmatmul.mubr.f32.gmra.mrb[0].mxu0 %v163
  %v447 = vpop.f32.mrb[0].mxu0
  %v448 = vadd.f32 %v303, %v447
  %v449 = vpop.f32.mrb[0].mxu0
  %450 = vmatprep.mubr.f32.mxu0 0.0
  %451 = vmatmul.mubr.f32.gmra.mrb[0].mxu0 %v166
  %v452 = vpop.f32.mrb[0].mxu0
  %v453 = vadd.f32 %v308, %v452
  %v454 = vpop.f32.mrb[0].mxu0
  %455 = vmatprep.mubr.f32.mxu0 0.0
  %456 = vmatmul.mubr.f32.gmra.mrb[0].mxu0 %v169
  %v457 = vpop.f32.mrb[0].mxu0
  %v458 = vadd.f32 %v313, %v457
  %v459 = vpop.f32.mrb[0].mxu0
  %460 = vmatprep.mubr.f32.mxu0 0.0
  %461 = vmatmul.mubr.f32.gmra.mrb[0].mxu0 %v172
  %v462 = vpop.f32.mrb[0].mxu0
  %v463 = vadd.f32 %v318, %v462
  %v464 = vpop.f32.mrb[0].mxu0
  %465 = vmatprep.mubr.f32.mxu0 0.0
  %466 = vmatmul.mubr.f32.gmra.mrb[0].mxu0 %v175
  %v467 = vpop.f32.mrb[0].mxu0
  %v468 = vadd.f32 %v323, %v467
  %v469 = vpop.f32.mrb[0].mxu0
  %470 = vdwg.mxu0
  %v471 = vmax.f32 %v393, 0.0
  %v472 = vmax.f32 %v398, 0.0
  %v473 = vmax.f32 %v403, 0.0
  %v474 = vmax.f32 %v408, 0.0
  %v475 = vmax.f32 %v413, 0.0
  %v476 = vmax.f32 %v418, 0.0
  %v477 = vmax.f32 %v423, 0.0
  %v478 = vmax.f32 %v428, 0.0
  %v479 = vmax.f32 %v433, 0.0
  %v480 = vmax.f32 %v438, 0.0
  %v481 = vmax.f32 %v443, 0.0
  %v482 = vmax.f32 %v448, 0.0
  %v483 = vmax.f32 %v453, 0.0
  %v484 = vmax.f32 %v458, 0.0
  %v485 = vmax.f32 %v463, 0.0
  %v486 = vmax.f32 %v468, 0.0
  %v487 = vld [vmem:[%s3] sm:$0xff]
  %v488 = vld [vmem:[%s3 + $0x8] sm:$0xff]
  %v489 = vld [vmem:[%s3 + $0x10] sm:$0xff]
  %v490 = vld [vmem:[%s3 + $0x18] sm:$0xff]
  %v491 = vld [vmem:[%s3 + $0x20] sm:$0xff]
  %v492 = vld [vmem:[%s3 + $0x28] sm:$0xff]
  %v493 = vld [vmem:[%s3 + $0x30] sm:$0xff]
  %v494 = vld [vmem:[%s3 + $0x38] sm:$0xff]
  %v495 = vld [vmem:[%s3 + $0x40] sm:$0xff]
  %v496 = vld [vmem:[%s3 + $0x48] sm:$0xff]
  %v497 = vld [vmem:[%s3 + $0x50] sm:$0xff]
  %v498 = vld [vmem:[%s3 + $0x58] sm:$0xff]
  %v499 = vld [vmem:[%s3 + $0x60] sm:$0xff]
  %v500 = vld [vmem:[%s3 + $0x68] sm:$0xff]
  %v501 = vld [vmem:[%s3 + $0x70] sm:$0xff]
  %v502 = vld [vmem:[%s3 + $0x78] sm:$0xff]
  %v503 = vld [vmem:[%s4] sm:$0x1]
  %v505 = vlaneseq
  %v506 = vshrl.u32 %v505, 7
  %v507 = vsub.s32 0, %v506
  %v508 = vrot.slane %v503, %v507
  %510 = vmatprep.subr.mxu0 0.0
  %511 = vmatpush1.msra.mxu0 %v487
  %512 = vmatprep.subr.mxu0 0.0
  %513 = vmatpush1.msra.mxu0 %v488
  %514 = vmatprep.subr.mxu0 0.0
  %515 = vmatpush1.msra.mxu0 %v489
  %516 = vmatprep.subr.mxu0 0.0
  %517 = vmatpush1.msra.mxu0 %v490
  %518 = vmatprep.subr.mxu0 0.0
  %519 = vmatpush1.msra.mxu0 %v491
  %520 = vmatprep.subr.mxu0 0.0
  %521 = vmatpush1.msra.mxu0 %v492
  %522 = vmatprep.subr.mxu0 0.0
  %523 = vmatpush1.msra.mxu0 %v493
  %524 = vmatprep.subr.mxu0 0.0
  %525 = vmatpush1.msra.mxu0 %v494
  %526 = vmatprep.subr.mxu0 0.0
  %527 = vmatpush1.msra.mxu0 %v495
  %528 = vmatprep.subr.mxu0 0.0
  %529 = vmatpush1.msra.mxu0 %v496
  %530 = vmatprep.subr.mxu0 0.0
  %531 = vmatpush1.msra.mxu0 %v497
  %532 = vmatprep.subr.mxu0 0.0
  %533 = vmatpush1.msra.mxu0 %v498
  %534 = vmatprep.subr.mxu0 0.0
  %535 = vmatpush1.msra.mxu0 %v499
  %536 = vmatprep.subr.mxu0 0.0
  %537 = vmatpush1.msra.mxu0 %v500
  %538 = vmatprep.subr.mxu0 0.0
  %539 = vmatpush1.msra.mxu0 %v501
  %540 = vmatprep.subr.mxu0 0.0
  %541 = vmatpush1.msra.mxu0 %v502
  %542 = vmatprep.subr.mxu0 0.0
  %543 = vmatpush1.msra.mxu0 0.0
  %544 = vmatprep.subr.mxu0 0.0
  %545 = vmatpush1.msra.mxu0 0.0
  %546 = vmatprep.subr.mxu0 0.0
  %547 = vmatpush1.msra.mxu0 0.0
  %548 = vmatprep.subr.mxu0 0.0
  %549 = vmatpush1.msra.mxu0 0.0
  %550 = vmatprep.subr.mxu0 0.0
  %551 = vmatpush1.msra.mxu0 0.0
  %552 = vmatprep.subr.mxu0 0.0
  %553 = vmatpush1.msra.mxu0 0.0
  %554 = vmatprep.subr.mxu0 0.0
  %555 = vmatpush1.msra.mxu0 0.0
  %556 = vmatprep.subr.mxu0 0.0
  %557 = vmatpush1.msra.mxu0 0.0
  %558 = vmatprep.subr.mxu0 0.0
  %559 = vmatpush1.msra.mxu0 0.0
  %560 = vmatprep.subr.mxu0 0.0
  %561 = vmatpush1.msra.mxu0 0.0
  %562 = vmatprep.subr.mxu0 0.0
  %563 = vmatpush1.msra.mxu0 0.0
  %564 = vmatprep.subr.mxu0 0.0
  %565 = vmatpush1.msra.mxu0 0.0
  %566 = vmatprep.subr.mxu0 0.0
  %567 = vmatpush1.msra.mxu0 0.0
  %568 = vmatprep.subr.mxu0 0.0
  %569 = vmatpush1.msra.mxu0 0.0
  %570 = vmatprep.subr.mxu0 0.0
  %571 = vmatpush1.msra.mxu0 0.0
  %572 = vmatprep.subr.mxu0 0.0
  %573 = vmatpush1.msra.mxu0 0.0
  %574 = vmatprep.mubr.f32.mxu0 0.0
  %575 = vmatmul.mubr.f32.gmra.mrb[0].mxu0 %v471
  %v576 = vpop.f32.mrb[0].mxu0
  %v577 = vadd.f32 %v508, %v576
  %v578 = vpop.f32.mrb[0].mxu0
  %579 = vmatprep.mubr.f32.mxu0 0.0
  %580 = vmatmul.mubr.f32.gmra.mrb[0].mxu0 %v472
  %v581 = vpop.f32.mrb[0].mxu0
  %v582 = vadd.f32 %v508, %v581
  %v583 = vpop.f32.mrb[0].mxu0
  %584 = vmatprep.mubr.f32.mxu0 0.0
  %585 = vmatmul.mubr.f32.gmra.mrb[0].mxu0 %v473
  %v586 = vpop.f32.mrb[0].mxu0
  %v587 = vadd.f32 %v508, %v586
  %v588 = vpop.f32.mrb[0].mxu0
  %589 = vmatprep.mubr.f32.mxu0 0.0
  %590 = vmatmul.mubr.f32.gmra.mrb[0].mxu0 %v474
  %v591 = vpop.f32.mrb[0].mxu0
  %v592 = vadd.f32 %v508, %v591
  %v593 = vpop.f32.mrb[0].mxu0
  %594 = vmatprep.mubr.f32.mxu0 0.0
  %595 = vmatmul.mubr.f32.gmra.mrb[0].mxu0 %v475
  %v596 = vpop.f32.mrb[0].mxu0
  %v597 = vadd.f32 %v508, %v596
  %v598 = vpop.f32.mrb[0].mxu0
  %599 = vmatprep.mubr.f32.mxu0 0.0
  %600 = vmatmul.mubr.f32.gmra.mrb[0].mxu0 %v476
  %v601 = vpop.f32.mrb[0].mxu0
  %v602 = vadd.f32 %v508, %v601
  %v603 = vpop.f32.mrb[0].mxu0
  %604 = vmatprep.mubr.f32.mxu0 0.0
  %605 = vmatmul.mubr.f32.gmra.mrb[0].mxu0 %v477
  %v606 = vpop.f32.mrb[0].mxu0
  %v607 = vadd.f32 %v508, %v606
  %v608 = vpop.f32.mrb[0].mxu0
  %609 = vmatprep.mubr.f32.mxu0 0.0
  %610 = vmatmul.mubr.f32.gmra.mrb[0].mxu0 %v478
  %v611 = vpop.f32.mrb[0].mxu0
  %v612 = vadd.f32 %v508, %v611
  %v613 = vpop.f32.mrb[0].mxu0
  %614 = vmatprep.mubr.f32.mxu0 0.0
  %615 = vmatmul.mubr.f32.gmra.mrb[0].mxu0 %v479
  %v616 = vpop.f32.mrb[0].mxu0
  %v617 = vadd.f32 %v508, %v616
  %v618 = vpop.f32.mrb[0].mxu0
  %619 = vmatprep.mubr.f32.mxu0 0.0
  %620 = vmatmul.mubr.f32.gmra.mrb[0].mxu0 %v480
  %v621 = vpop.f32.mrb[0].mxu0
  %v622 = vadd.f32 %v508, %v621
  %v623 = vpop.f32.mrb[0].mxu0
  %624 = vmatprep.mubr.f32.mxu0 0.0
  %625 = vmatmul.mubr.f32.gmra.mrb[0].mxu0 %v481
  %v626 = vpop.f32.mrb[0].mxu0
  %v627 = vadd.f32 %v508, %v626
  %v628 = vpop.f32.mrb[0].mxu0
  %629 = vmatprep.mubr.f32.mxu0 0.0
  %630 = vmatmul.mubr.f32.gmra.mrb[0].mxu0 %v482
  %v631 = vpop.f32.mrb[0].mxu0
  %v632 = vadd.f32 %v508, %v631
  %v633 = vpop.f32.mrb[0].mxu0
  %634 = vmatprep.mubr.f32.mxu0 0.0
  %635 = vmatmul.mubr.f32.gmra.mrb[0].mxu0 %v483
  %v636 = vpop.f32.mrb[0].mxu0
  %v637 = vadd.f32 %v508, %v636
  %v638 = vpop.f32.mrb[0].mxu0
  %639 = vmatprep.mubr.f32.mxu0 0.0
  %640 = vmatmul.mubr.f32.gmra.mrb[0].mxu0 %v484
  %v641 = vpop.f32.mrb[0].mxu0
  %v642 = vadd.f32 %v508, %v641
  %v643 = vpop.f32.mrb[0].mxu0
  %644 = vmatprep.mubr.f32.mxu0 0.0
  %645 = vmatmul.mubr.f32.gmra.mrb[0].mxu0 %v485
  %v646 = vpop.f32.mrb[0].mxu0
  %v647 = vadd.f32 %v508, %v646
  %v648 = vpop.f32.mrb[0].mxu0
  %649 = vmatprep.mubr.f32.mxu0 0.0
  %650 = vmatmul.mubr.f32.gmra.mrb[0].mxu0 %v486
  %v651 = vpop.f32.mrb[0].mxu0
  %v652 = vadd.f32 %v508, %v651
  %v653 = vpop.f32.mrb[0].mxu0
  %654 = vdwg.mxu0
  %v655 = vmax.f32 %v577, 0.0
  %v656 = vmax.f32 %v582, 0.0
  %v657 = vmax.f32 %v587, 0.0
  %v658 = vmax.f32 %v592, 0.0
  %v659 = vmax.f32 %v597, 0.0
  %v660 = vmax.f32 %v602, 0.0
  %v661 = vmax.f32 %v607, 0.0
  %v662 = vmax.f32 %v612, 0.0
  %v663 = vmax.f32 %v617, 0.0
  %v664 = vmax.f32 %v622, 0.0
  %v665 = vmax.f32 %v627, 0.0
  %v666 = vmax.f32 %v632, 0.0
  %v667 = vmax.f32 %v637, 0.0
  %v668 = vmax.f32 %v642, 0.0
  %v669 = vmax.f32 %v647, 0.0
  %v670 = vmax.f32 %v652, 0.0
  %v671 = vld [vmem:[%s5] sm:$0xff]
  %v672 = vld [vmem:[%s5 + $0x8] sm:$0xff]
  %v673 = vld [vmem:[%s5 + $0x10] sm:$0xff]
  %v674 = vld [vmem:[%s5 + $0x18] sm:$0xff]
  %v675 = vld [vmem:[%s5 + $0x20] sm:$0xff]
  %v676 = vld [vmem:[%s5 + $0x28] sm:$0xff]
  %v677 = vld [vmem:[%s5 + $0x30] sm:$0xff]
  %v678 = vld [vmem:[%s5 + $0x38] sm:$0xff]
  %v679 = vld [vmem:[%s5 + $0x40] sm:$0xff]
  %v680 = vld [vmem:[%s5 + $0x48] sm:$0xff]
  %v681 = vld [vmem:[%s5 + $0x50] sm:$0xff]
  %v682 = vld [vmem:[%s5 + $0x58] sm:$0xff]
  %v683 = vld [vmem:[%s5 + $0x60] sm:$0xff]
  %v684 = vld [vmem:[%s5 + $0x68] sm:$0xff]
  %v685 = vld [vmem:[%s5 + $0x70] sm:$0xff]
  %v686 = vld [vmem:[%s5 + $0x78] sm:$0xff]
  %v687 = vld [vmem:[%s6] sm:$0xff]
  %v688 = vld [vmem:[%s6 + $0x8] sm:$0xff]
  %v689 = vld [vmem:[%s6 + $0x10] sm:$0xff]
  %v690 = vld [vmem:[%s6 + $0x18] sm:$0xff]
  %v691 = vld [vmem:[%s6 + $0x20] sm:$0xff]
  %v692 = vld [vmem:[%s6 + $0x28] sm:$0xff]
  %v693 = vld [vmem:[%s6 + $0x30] sm:$0xff]
  %v694 = vld [vmem:[%s6 + $0x38] sm:$0xff]
  %v695 = vld [vmem:[%s6 + $0x40] sm:$0xff]
  %v696 = vld [vmem:[%s6 + $0x48] sm:$0xff]
  %v697 = vld [vmem:[%s6 + $0x50] sm:$0xff]
  %v698 = vld [vmem:[%s6 + $0x58] sm:$0xff]
  %v699 = vld [vmem:[%s6 + $0x60] sm:$0xff]
  %v700 = vld [vmem:[%s6 + $0x68] sm:$0xff]
  %v701 = vld [vmem:[%s6 + $0x70] sm:$0xff]
  %v702 = vld [vmem:[%s6 + $0x78] sm:$0xff]
  %703 = vmatprep.subr.mxu0 0.0
  %704 = vmatpush1.msra.mxu0 %v687
  %705 = vmatprep.subr.mxu0 0.0
  %706 = vmatpush1.msra.mxu0 %v688
  %707 = vmatprep.subr.mxu0 0.0
  %708 = vmatpush1.msra.mxu0 %v689
  %709 = vmatprep.subr.mxu0 0.0
  %710 = vmatpush1.msra.mxu0 %v690
  %711 = vmatprep.subr.mxu0 0.0
  %712 = vmatpush1.msra.mxu0 %v691
  %713 = vmatprep.subr.mxu0 0.0
  %714 = vmatpush1.msra.mxu0 %v692
  %715 = vmatprep.subr.mxu0 0.0
  %716 = vmatpush1.msra.mxu0 %v693
  %717 = vmatprep.subr.mxu0 0.0
  %718 = vmatpush1.msra.mxu0 %v694
  %719 = vmatprep.subr.mxu0 0.0
  %720 = vmatpush1.msra.mxu0 %v695
  %721 = vmatprep.subr.mxu0 0.0
  %722 = vmatpush1.msra.mxu0 %v696
  %723 = vmatprep.subr.mxu0 0.0
  %724 = vmatpush1.msra.mxu0 %v697
  %725 = vmatprep.subr.mxu0 0.0
  %726 = vmatpush1.msra.mxu0 %v698
  %727 = vmatprep.subr.mxu0 0.0
  %728 = vmatpush1.msra.mxu0 %v699
  %729 = vmatprep.subr.mxu0 0.0
  %730 = vmatpush1.msra.mxu0 %v700
  %731 = vmatprep.subr.mxu0 0.0
  %732 = vmatpush1.msra.mxu0 %v701
  %733 = vmatprep.subr.mxu0 0.0
  %734 = vmatpush1.msra.mxu0 %v702
  %735 = vmatprep.subr.mxu0 0.0
  %736 = vmatpush1.msra.mxu0 0.0
  %737 = vmatprep.subr.mxu0 0.0
  %738 = vmatpush1.msra.mxu0 0.0
  %739 = vmatprep.subr.mxu0 0.0
  %740 = vmatpush1.msra.mxu0 0.0
  %741 = vmatprep.subr.mxu0 0.0
  %742 = vmatpush1.msra.mxu0 0.0
  %743 = vmatprep.subr.mxu0 0.0
  %744 = vmatpush1.msra.mxu0 0.0
  %745 = vmatprep.subr.mxu0 0.0
  %746 = vmatpush1.msra.mxu0 0.0
  %747 = vmatprep.subr.mxu0 0.0
  %748 = vmatpush1.msra.mxu0 0.0
  %749 = vmatprep.subr.mxu0 0.0
  %750 = vmatpush1.msra.mxu0 0.0
  %751 = vmatprep.subr.mxu0 0.0
  %752 = vmatpush1.msra.mxu0 0.0
  %753 = vmatprep.subr.mxu0 0.0
  %754 = vmatpush1.msra.mxu0 0.0
  %755 = vmatprep.subr.mxu0 0.0
  %756 = vmatpush1.msra.mxu0 0.0
  %757 = vmatprep.subr.mxu0 0.0
  %758 = vmatpush1.msra.mxu0 0.0
  %759 = vmatprep.subr.mxu0 0.0
  %760 = vmatpush1.msra.mxu0 0.0
  %761 = vmatprep.subr.mxu0 0.0
  %762 = vmatpush1.msra.mxu0 0.0
  %763 = vmatprep.subr.mxu0 0.0
  %764 = vmatpush1.msra.mxu0 0.0
  %765 = vmatprep.subr.mxu0 0.0
  %766 = vmatpush1.msra.mxu0 0.0
  %767 = vmatprep.mubr.f32.mxu0 0.0
  %768 = vmatmul.mubr.f32.gmra.mrb[0].mxu0 %v655
  %v769 = vpop.f32.mrb[0].mxu0
  %v770 = vadd.f32 0.0, %v769
  %v771 = vpop.f32.mrb[0].mxu0
  %772 = vmatprep.mubr.f32.mxu0 0.0
  %773 = vmatmul.mubr.f32.gmra.mrb[0].mxu0 %v656
  %v774 = vpop.f32.mrb[0].mxu0
  %v775 = vadd.f32 0.0, %v774
  %v776 = vpop.f32.mrb[0].mxu0
  %777 = vmatprep.mubr.f32.mxu0 0.0
  %778 = vmatmul.mubr.f32.gmra.mrb[0].mxu0 %v657
  %v779 = vpop.f32.mrb[0].mxu0
  %v780 = vadd.f32 0.0, %v779
  %v781 = vpop.f32.mrb[0].mxu0
  %782 = vmatprep.mubr.f32.mxu0 0.0
  %783 = vmatmul.mubr.f32.gmra.mrb[0].mxu0 %v658
  %v784 = vpop.f32.mrb[0].mxu0
  %v785 = vadd.f32 0.0, %v784
  %v786 = vpop.f32.mrb[0].mxu0
  %787 = vmatprep.mubr.f32.mxu0 0.0
  %788 = vmatmul.mubr.f32.gmra.mrb[0].mxu0 %v659
  %v789 = vpop.f32.mrb[0].mxu0
  %v790 = vadd.f32 0.0, %v789
  %v791 = vpop.f32.mrb[0].mxu0
  %792 = vmatprep.mubr.f32.mxu0 0.0
  %793 = vmatmul.mubr.f32.gmra.mrb[0].mxu0 %v660
  %v794 = vpop.f32.mrb[0].mxu0
  %v795 = vadd.f32 0.0, %v794
  %v796 = vpop.f32.mrb[0].mxu0
  %797 = vmatprep.mubr.f32.mxu0 0.0
  %798 = vmatmul.mubr.f32.gmra.mrb[0].mxu0 %v661
  %v799 = vpop.f32.mrb[0].mxu0
  %v800 = vadd.f32 0.0, %v799
  %v801 = vpop.f32.mrb[0].mxu0
  %802 = vmatprep.mubr.f32.mxu0 0.0
  %803 = vmatmul.mubr.f32.gmra.mrb[0].mxu0 %v662
  %v804 = vpop.f32.mrb[0].mxu0
  %v805 = vadd.f32 0.0, %v804
  %v806 = vpop.f32.mrb[0].mxu0
  %807 = vmatprep.mubr.f32.mxu0 0.0
  %808 = vmatmul.mubr.f32.gmra.mrb[0].mxu0 %v663
  %v809 = vpop.f32.mrb[0].mxu0
  %v810 = vadd.f32 0.0, %v809
  %v811 = vpop.f32.mrb[0].mxu0
  %812 = vmatprep.mubr.f32.mxu0 0.0
  %813 = vmatmul.mubr.f32.gmra.mrb[0].mxu0 %v664
  %v814 = vpop.f32.mrb[0].mxu0
  %v815 = vadd.f32 0.0, %v814
  %v816 = vpop.f32.mrb[0].mxu0
  %817 = vmatprep.mubr.f32.mxu0 0.0
  %818 = vmatmul.mubr.f32.gmra.mrb[0].mxu0 %v665
  %v819 = vpop.f32.mrb[0].mxu0
  %v820 = vadd.f32 0.0, %v819
  %v821 = vpop.f32.mrb[0].mxu0
  %822 = vmatprep.mubr.f32.mxu0 0.0
  %823 = vmatmul.mubr.f32.gmra.mrb[0].mxu0 %v666
  %v824 = vpop.f32.mrb[0].mxu0
  %v825 = vadd.f32 0.0, %v824
  %v826 = vpop.f32.mrb[0].mxu0
  %827 = vmatprep.mubr.f32.mxu0 0.0
  %828 = vmatmul.mubr.f32.gmra.mrb[0].mxu0 %v667
  %v829 = vpop.f32.mrb[0].mxu0
  %v830 = vadd.f32 0.0, %v829
  %v831 = vpop.f32.mrb[0].mxu0
  %832 = vmatprep.mubr.f32.mxu0 0.0
  %833 = vmatmul.mubr.f32.gmra.mrb[0].mxu0 %v668
  %v834 = vpop.f32.mrb[0].mxu0
  %v835 = vadd.f32 0.0, %v834
  %v836 = vpop.f32.mrb[0].mxu0
  %837 = vmatprep.mubr.f32.mxu0 0.0
  %838 = vmatmul.mubr.f32.gmra.mrb[0].mxu0 %v669
  %v839 = vpop.f32.mrb[0].mxu0
  %v840 = vadd.f32 0.0, %v839
  %v841 = vpop.f32.mrb[0].mxu0
  %842 = vmatprep.mubr.f32.mxu0 0.0
  %843 = vmatmul.mubr.f32.gmra.mrb[0].mxu0 %v670
  %v844 = vpop.f32.mrb[0].mxu0
  %v845 = vadd.f32 0.0, %v844
  %v846 = vpop.f32.mrb[0].mxu0
  %847 = vdwg.mxu0
  %848 = vmatprep.subr.mxu0 0.0
  %849 = vmatpush1.msra.mxu0 %v671
  %850 = vmatprep.subr.mxu0 0.0
  %851 = vmatpush1.msra.mxu0 %v672
  %852 = vmatprep.subr.mxu0 0.0
  %853 = vmatpush1.msra.mxu0 %v673
  %854 = vmatprep.subr.mxu0 0.0
  %855 = vmatpush1.msra.mxu0 %v674
  %856 = vmatprep.subr.mxu0 0.0
  %857 = vmatpush1.msra.mxu0 %v675
  %858 = vmatprep.subr.mxu0 0.0
  %859 = vmatpush1.msra.mxu0 %v676
  %860 = vmatprep.subr.mxu0 0.0
  %861 = vmatpush1.msra.mxu0 %v677
  %862 = vmatprep.subr.mxu0 0.0
  %863 = vmatpush1.msra.mxu0 %v678
  %864 = vmatprep.subr.mxu0 0.0
  %865 = vmatpush1.msra.mxu0 %v679
  %866 = vmatprep.subr.mxu0 0.0
  %867 = vmatpush1.msra.mxu0 %v680
  %868 = vmatprep.subr.mxu0 0.0
  %869 = vmatpush1.msra.mxu0 %v681
  %870 = vmatprep.subr.mxu0 0.0
  %871 = vmatpush1.msra.mxu0 %v682
  %872 = vmatprep.subr.mxu0 0.0
  %873 = vmatpush1.msra.mxu0 %v683
  %874 = vmatprep.subr.mxu0 0.0
  %875 = vmatpush1.msra.mxu0 %v684
  %876 = vmatprep.subr.mxu0 0.0
  %877 = vmatpush1.msra.mxu0 %v685
  %878 = vmatprep.subr.mxu0 0.0
  %879 = vmatpush1.msra.mxu0 %v686
  %880 = vmatprep.subr.mxu0 0.0
  %881 = vmatpush1.msra.mxu0 0.0
  %882 = vmatprep.subr.mxu0 0.0
  %883 = vmatpush1.msra.mxu0 0.0
  %884 = vmatprep.subr.mxu0 0.0
  %885 = vmatpush1.msra.mxu0 0.0
  %886 = vmatprep.subr.mxu0 0.0
  %887 = vmatpush1.msra.mxu0 0.0
  %888 = vmatprep.subr.mxu0 0.0
  %889 = vmatpush1.msra.mxu0 0.0
  %890 = vmatprep.subr.mxu0 0.0
  %891 = vmatpush1.msra.mxu0 0.0
  %892 = vmatprep.subr.mxu0 0.0
  %893 = vmatpush1.msra.mxu0 0.0
  %894 = vmatprep.subr.mxu0 0.0
  %895 = vmatpush1.msra.mxu0 0.0
  %896 = vmatprep.subr.mxu0 0.0
  %897 = vmatpush1.msra.mxu0 0.0
  %898 = vmatprep.subr.mxu0 0.0
  %899 = vmatpush1.msra.mxu0 0.0
  %900 = vmatprep.subr.mxu0 0.0
  %901 = vmatpush1.msra.mxu0 0.0
  %902 = vmatprep.subr.mxu0 0.0
  %903 = vmatpush1.msra.mxu0 0.0
  %904 = vmatprep.subr.mxu0 0.0
  %905 = vmatpush1.msra.mxu0 0.0
  %906 = vmatprep.subr.mxu0 0.0
  %907 = vmatpush1.msra.mxu0 0.0
  %908 = vmatprep.subr.mxu0 0.0
  %909 = vmatpush1.msra.mxu0 0.0
  %910 = vmatprep.subr.mxu0 0.0
  %911 = vmatpush1.msra.mxu0 0.0
  %912 = vmatprep.mubr.f32.mxu0 0.0
  %913 = vmatmul.mubr.f32.gmra.mrb[0].mxu0 %v471
  %v914 = vpop.f32.mrb[0].mxu0
  %v915 = vadd.f32 %v770, %v914
  %v916 = vpop.f32.mrb[0].mxu0
  %917 = vmatprep.mubr.f32.mxu0 0.0
  %918 = vmatmul.mubr.f32.gmra.mrb[0].mxu0 %v472
  %v919 = vpop.f32.mrb[0].mxu0
  %v920 = vadd.f32 %v775, %v919
  %v921 = vpop.f32.mrb[0].mxu0
  %922 = vmatprep.mubr.f32.mxu0 0.0
  %923 = vmatmul.mubr.f32.gmra.mrb[0].mxu0 %v473
  %v924 = vpop.f32.mrb[0].mxu0
  %v925 = vadd.f32 %v780, %v924
  %v926 = vpop.f32.mrb[0].mxu0
  %927 = vmatprep.mubr.f32.mxu0 0.0
  %928 = vmatmul.mubr.f32.gmra.mrb[0].mxu0 %v474
  %v929 = vpop.f32.mrb[0].mxu0
  %v930 = vadd.f32 %v785, %v929
  %v931 = vpop.f32.mrb[0].mxu0
  %932 = vmatprep.mubr.f32.mxu0 0.0
  %933 = vmatmul.mubr.f32.gmra.mrb[0].mxu0 %v475
  %v934 = vpop.f32.mrb[0].mxu0
  %v935 = vadd.f32 %v790, %v934
  %v936 = vpop.f32.mrb[0].mxu0
  %937 = vmatprep.mubr.f32.mxu0 0.0
  %938 = vmatmul.mubr.f32.gmra.mrb[0].mxu0 %v476
  %v939 = vpop.f32.mrb[0].mxu0
  %v940 = vadd.f32 %v795, %v939
  %v941 = vpop.f32.mrb[0].mxu0
  %942 = vmatprep.mubr.f32.mxu0 0.0
  %943 = vmatmul.mubr.f32.gmra.mrb[0].mxu0 %v477
  %v944 = vpop.f32.mrb[0].mxu0
  %v945 = vadd.f32 %v800, %v944
  %v946 = vpop.f32.mrb[0].mxu0
  %947 = vmatprep.mubr.f32.mxu0 0.0
  %948 = vmatmul.mubr.f32.gmra.mrb[0].mxu0 %v478
  %v949 = vpop.f32.mrb[0].mxu0
  %v950 = vadd.f32 %v805, %v949
  %v951 = vpop.f32.mrb[0].mxu0
  %952 = vmatprep.mubr.f32.mxu0 0.0
  %953 = vmatmul.mubr.f32.gmra.mrb[0].mxu0 %v479
  %v954 = vpop.f32.mrb[0].mxu0
  %v955 = vadd.f32 %v810, %v954
  %v956 = vpop.f32.mrb[0].mxu0
  %957 = vmatprep.mubr.f32.mxu0 0.0
  %958 = vmatmul.mubr.f32.gmra.mrb[0].mxu0 %v480
  %v959 = vpop.f32.mrb[0].mxu0
  %v960 = vadd.f32 %v815, %v959
  %v961 = vpop.f32.mrb[0].mxu0
  %962 = vmatprep.mubr.f32.mxu0 0.0
  %963 = vmatmul.mubr.f32.gmra.mrb[0].mxu0 %v481
  %v964 = vpop.f32.mrb[0].mxu0
  %v965 = vadd.f32 %v820, %v964
  %v966 = vpop.f32.mrb[0].mxu0
  %967 = vmatprep.mubr.f32.mxu0 0.0
  %968 = vmatmul.mubr.f32.gmra.mrb[0].mxu0 %v482
  %v969 = vpop.f32.mrb[0].mxu0
  %v970 = vadd.f32 %v825, %v969
  %v971 = vpop.f32.mrb[0].mxu0
  %972 = vmatprep.mubr.f32.mxu0 0.0
  %973 = vmatmul.mubr.f32.gmra.mrb[0].mxu0 %v483
  %v974 = vpop.f32.mrb[0].mxu0
  %v975 = vadd.f32 %v830, %v974
  %v976 = vpop.f32.mrb[0].mxu0
  %977 = vmatprep.mubr.f32.mxu0 0.0
  %978 = vmatmul.mubr.f32.gmra.mrb[0].mxu0 %v484
  %v979 = vpop.f32.mrb[0].mxu0
  %v980 = vadd.f32 %v835, %v979
  %v981 = vpop.f32.mrb[0].mxu0
  %982 = vmatprep.mubr.f32.mxu0 0.0
  %983 = vmatmul.mubr.f32.gmra.mrb[0].mxu0 %v485
  %v984 = vpop.f32.mrb[0].mxu0
  %v985 = vadd.f32 %v840, %v984
  %v986 = vpop.f32.mrb[0].mxu0
  %987 = vmatprep.mubr.f32.mxu0 0.0
  %988 = vmatmul.mubr.f32.gmra.mrb[0].mxu0 %v486
  %v989 = vpop.f32.mrb[0].mxu0
  %v990 = vadd.f32 %v845, %v989
  %v991 = vpop.f32.mrb[0].mxu0
  %992 = vdwg.mxu0
  %s993 = sld [smem:[#allocation2]]
  %v994 = vstv %s993
  %v995 = vadd.f32 %v915, %v994
  %v996 = vadd.f32 %v920, %v994
  %v997 = vadd.f32 %v925, %v994
  %v998 = vadd.f32 %v930, %v994
  %v999 = vadd.f32 %v935, %v994
  %v1000 = vadd.f32 %v940, %v994
  %v1001 = vadd.f32 %v945, %v994
  %v1002 = vadd.f32 %v950, %v994
  %v1003 = vadd.f32 %v955, %v994
  %v1004 = vadd.f32 %v960, %v994
  %v1005 = vadd.f32 %v965, %v994
  %v1006 = vadd.f32 %v970, %v994
  %v1007 = vadd.f32 %v975, %v994
  %v1008 = vadd.f32 %v980, %v994
  %v1009 = vadd.f32 %v985, %v994
  %v1010 = vadd.f32 %v990, %v994
  %vm1011 = vcmask 7168
  %1012 = vst.msk [vmem:[%s8] sm:$0xff] %vm1011, %v995
  %1013 = vst.msk [vmem:[%s8 + $0x8] sm:$0xff] %vm1011, %v996
  %1014 = vst.msk [vmem:[%s8 + $0x10] sm:$0xff] %vm1011, %v997
  %1015 = vst.msk [vmem:[%s8 + $0x18] sm:$0xff] %vm1011, %v998
  %1016 = vst.msk [vmem:[%s8 + $0x20] sm:$0xff] %vm1011, %v999
  %1017 = vst.msk [vmem:[%s8 + $0x28] sm:$0xff] %vm1011, %v1000
  %1018 = vst.msk [vmem:[%s8 + $0x30] sm:$0xff] %vm1011, %v1001
  %1019 = vst.msk [vmem:[%s8 + $0x38] sm:$0xff] %vm1011, %v1002
  %1020 = vst.msk [vmem:[%s8 + $0x40] sm:$0xff] %vm1011, %v1003
  %1021 = vst.msk [vmem:[%s8 + $0x48] sm:$0xff] %vm1011, %v1004
  %1022 = vst.msk [vmem:[%s8 + $0x50] sm:$0xff] %vm1011, %v1005
  %1023 = vst.msk [vmem:[%s8 + $0x58] sm:$0xff] %vm1011, %v1006
  %1024 = vst.msk [vmem:[%s8 + $0x60] sm:$0xff] %vm1011, %v1007
  %1025 = vst.msk [vmem:[%s8 + $0x68] sm:$0xff] %vm1011, %v1008
  %1026 = vst.msk [vmem:[%s8 + $0x70] sm:$0xff] %vm1011, %v1009
  %1027 = vst.msk [vmem:[%s8 + $0x78] sm:$0xff] %vm1011, %v1010
  // Predicated region
  $region34: #{tpu_custom_call.1} parent=0 // pred_check
    _
  $region35: #{tpu_custom_call.1} parent=0 // pred_check_branch
    %1029 = sbr.rel (0) target = $region37
  $region36: #{tpu_custom_call.1} parent=0 // pred_region
    _
  $region37: #{tpu_custom_call.1} parent=0 // pred_fallthru
    _
  // Predicated region
  $region38: #{tpu_custom_call.1} parent=0 // pred_check
    _
  $region39: #{tpu_custom_call.1} parent=0 // pred_check_branch
    %1031 = sbr.rel (0) target = $region41
  $region40: #{tpu_custom_call.1} parent=0 // pred_region
    _
  $region41: #{tpu_custom_call.1} parent=0 // pred_fallthru
    _

</llo_original>
